<compile_context>
chip_gen: v5e
topology: v5e:2x2
jax: 0.10.0
libtpu: 0.0.40
codegen_flags: <defaults>
</compile_context>

<pallas_src>
import functools

import jax
import jax.numpy as jnp
from jax.experimental import pallas as pl
from jax.experimental.pallas import tpu as pltpu


def _round_up(n, m):
    return ((n + m - 1) // m) * m


def _ln_rows(v, g, b, eps):
    """Row-wise LayerNorm over the last dim, single-pass moments, f32 math."""
    v = v.astype(jnp.float32)
    mean = jnp.mean(v, axis=-1, keepdims=True)
    mean_sq = jnp.mean(v * v, axis=-1, keepdims=True)
    inv = jax.lax.rsqrt(mean_sq - mean * mean + eps) * g.astype(jnp.float32)
    return (v - mean) * inv + b.astype(jnp.float32)


# ----------------------- standalone LayerNorm kernel ------------------------
# Fallback for the generic PreNorm2 path when x and x2 have different shapes.

def _layernorm_kernel(x_ref, gamma_ref, beta_ref, o_ref, *, eps):
    o_ref[...] = _ln_rows(x_ref[...], gamma_ref[...], beta_ref[...], eps).astype(o_ref.dtype)


def layernorm_pallas(x2d, gamma, beta, *, eps=1e-5, tm=512):
    """x2d: (R, D); gamma/beta: (D,). Row-wise LayerNorm over D."""
    R, D = x2d.shape
    tm = min(tm, _round_up(R, 8))
    # Tail blocks (R % tm != 0) run LayerNorm on padded rows (finite values);
    # Pallas drops the out-of-range output rows, so valid rows stay correct.
    return pl.pallas_call(
        functools.partial(_layernorm_kernel, eps=eps),
        out_shape=jax.ShapeDtypeStruct((R, D), x2d.dtype),
        grid_spec=pltpu.PrefetchScalarGridSpec(
            num_scalar_prefetch=0,
            grid=(pl.cdiv(R, tm),),
            in_specs=[
                pl.BlockSpec((tm, D), lambda i: (i, 0)),
                pl.BlockSpec((1, D), lambda i: (0, 0)),
                pl.BlockSpec((1, D), lambda i: (0, 0)),
            ],
            out_specs=pl.BlockSpec((tm, D), lambda i: (i, 0)),
        ),
        compiler_params=pltpu.CompilerParams(
            dimension_semantics=("parallel",),
            vmem_limit_bytes=32 * 1024 * 1024,
        ),
    )(x2d, gamma.reshape(1, D), beta.reshape(1, D))


# --------------- dual LayerNorm kernel (both norms in one call) --------------

def _dual_layernorm_kernel(x_ref, y_ref, g1_ref, b1_ref, g2_ref, b2_ref,
                           o1_ref, o2_ref, *, eps):
    o1_ref[...] = _ln_rows(x_ref[...], g1_ref[...], b1_ref[...], eps).astype(o1_ref.dtype)
    o2_ref[...] = _ln_rows(y_ref[...], g2_ref[...], b2_ref[...], eps).astype(o2_ref.dtype)


def dual_layernorm_pallas(x2d, y2d, g1, b1, g2, b2, *, eps=1e-5, tm=512):
    """LayerNorm(x2d) and LayerNorm(y2d) (same (R, D) shape) in one pallas_call."""
    R, D = x2d.shape
    tm = min(tm, _round_up(R, 8))
    return pl.pallas_call(
        functools.partial(_dual_layernorm_kernel, eps=eps),
        out_shape=(jax.ShapeDtypeStruct((R, D), x2d.dtype),
                   jax.ShapeDtypeStruct((R, D), y2d.dtype)),
        grid_spec=pltpu.PrefetchScalarGridSpec(
            num_scalar_prefetch=0,
            grid=(pl.cdiv(R, tm),),
            in_specs=[
                pl.BlockSpec((tm, D), lambda i: (i, 0)),   # x rows
                pl.BlockSpec((tm, D), lambda i: (i, 0)),   # x2 rows
                pl.BlockSpec((1, D), lambda i: (0, 0)),    # gamma1
                pl.BlockSpec((1, D), lambda i: (0, 0)),    # beta1
                pl.BlockSpec((1, D), lambda i: (0, 0)),    # gamma2
                pl.BlockSpec((1, D), lambda i: (0, 0)),    # beta2
            ],
            out_specs=[
                pl.BlockSpec((tm, D), lambda i: (i, 0)),
                pl.BlockSpec((tm, D), lambda i: (i, 0)),
            ],
        ),
        compiler_params=pltpu.CompilerParams(
            dimension_semantics=("parallel",),
            vmem_limit_bytes=32 * 1024 * 1024,
        ),
    )(x2d, y2d, g1.reshape(1, D), b1.reshape(1, D), g2.reshape(1, D), b2.reshape(1, D))


# -------------- fused kernel: LN(x), LN(x2), then a@W1 + c@W2 + b -----------

def _prenorm2_fused_kernel(x_ref, y_ref, g1_ref, b1_ref, g2_ref, b2_ref,
                           w1_ref, w2_ref, bias_ref, o_ref,
                           a_scr, c_scr, *, eps):
    # Recompute LayerNorms only when the row tile changes (j == 0); reuse the
    # VMEM-cached normalized tiles for all subsequent output-column tiles.
    @pl.when(pl.program_id(1) == 0)
    def _():
        a_scr[...] = _ln_rows(x_ref[...], g1_ref[...], b1_ref[...], eps)
        c_scr[...] = _ln_rows(y_ref[...], g2_ref[...], b2_ref[...], eps)

    acc = jnp.dot(a_scr[...].astype(w1_ref.dtype), w1_ref[...],
                  preferred_element_type=jnp.float32)
    acc = acc + jnp.dot(c_scr[...].astype(w2_ref.dtype), w2_ref[...],
                        preferred_element_type=jnp.float32)
    o_ref[...] = (acc + bias_ref[...].astype(jnp.float32)).astype(o_ref.dtype)


def prenorm2_linear_fused(x2d, y2d, g1, b1, g2, b2, w1, w2, bias, *,
                          eps=1e-5, tm=512, tn=512):
    """Fused PreNorm2 + linear combiner: out = LN1(x) @ w1 + LN2(y) @ w2 + bias.

    x2d/y2d: (R, D); w1/w2: (D, Dout); bias: (Dout,). LayerNorm needs the full
    row, so K (=D) stays whole per step; output columns are tiled by tn and the
    normalized activations are cached in VMEM across the j (column) axis.
    For very large D on v7x (64 MiB VMEM) add K-tiling with an f32 VMEM
    accumulator (pl.when init on k==0 / writeback on last k).
    """
    R, D = x2d.shape
    Dout = w1.shape[1]
    tm = min(tm, _round_up(R, 8))
    tn = min(tn, Dout)
    return pl.pallas_call(
        functools.partial(_prenorm2_fused_kernel, eps=eps),
        out_shape=jax.ShapeDtypeStruct((R, Dout), x2d.dtype),
        grid_spec=pltpu.PrefetchScalarGridSpec(
            num_scalar_prefetch=0,
            grid=(pl.cdiv(R, tm), pl.cdiv(Dout, tn)),
            in_specs=[
                pl.BlockSpec((tm, D), lambda i, j: (i, 0)),   # x rows
                pl.BlockSpec((tm, D), lambda i, j: (i, 0)),   # x2 rows
                pl.BlockSpec((1, D), lambda i, j: (0, 0)),    # gamma1
                pl.BlockSpec((1, D), lambda i, j: (0, 0)),    # beta1
                pl.BlockSpec((1, D), lambda i, j: (0, 0)),    # gamma2
                pl.BlockSpec((1, D), lambda i, j: (0, 0)),    # beta2
                pl.BlockSpec((D, tn), lambda i, j: (0, j)),   # w1 column tile
                pl.BlockSpec((D, tn), lambda i, j: (0, j)),   # w2 column tile
                pl.BlockSpec((1, tn), lambda i, j: (0, j)),   # bias column tile
            ],
            out_specs=pl.BlockSpec((tm, tn), lambda i, j: (i, j)),
            scratch_shapes=[
                pltpu.VMEM((tm, D), jnp.float32),   # LN(x) cache
                pltpu.VMEM((tm, D), jnp.float32),   # LN(x2) cache
            ],
        ),
        compiler_params=pltpu.CompilerParams(
            # j reuses the scratch written at j == 0 -> must stay sequential.
            dimension_semantics=("parallel", "arbitrary"),
            vmem_limit_bytes=32 * 1024 * 1024,
        ),
    )(x2d, y2d, g1.reshape(1, D), b1.reshape(1, D), g2.reshape(1, D),
      b2.reshape(1, D), w1, w2, bias.reshape(1, Dout))


# ------------------------------- PreNorm2 wrap -------------------------------

class PreNorm2Pallas:
    """PreNorm2(dim, fn): y = fn(LayerNorm(x), LayerNorm2(x2), **kwargs).

    LayerNorm parameters initialized as in nn.LayerNorm: weight=1, bias=0.
    `fn` is any callable taking two (..., dim) arrays. For the common
    linear-combiner fn there is a fully fused single-kernel fast path.
    """

    def __init__(self, dim, fn, eps=1e-5):
        self.dim = dim
        self.fn = fn
        self.eps = eps
        self.gamma1 = jnp.ones((dim,), jnp.float32)
        self.beta1 = jnp.zeros((dim,), jnp.float32)
        self.gamma2 = jnp.ones((dim,), jnp.float32)
        self.beta2 = jnp.zeros((dim,), jnp.float32)

    def __call__(self, x, x2, **kwargs):
        D = x.shape[-1]
        assert D == self.dim and x2.shape[-1] == self.dim
        if x.shape == x2.shape:
            # Both LayerNorms in one pallas_call (shared pipeline, one launch).
            a2d, c2d = dual_layernorm_pallas(
                x.reshape(-1, D), x2.reshape(-1, D),
                self.gamma1, self.beta1, self.gamma2, self.beta2, eps=self.eps)
            a = a2d.reshape(x.shape)
            c = c2d.reshape(x2.shape)
        else:
            a = layernorm_pallas(x.reshape(-1, D), self.gamma1, self.beta1,
                                 eps=self.eps).reshape(x.shape)
            c = layernorm_pallas(x2.reshape(-1, D), self.gamma2, self.beta2,
                                 eps=self.eps).reshape(x2.shape)
        return self.fn(a, c, **kwargs)

    def fused_linear(self, x, x2, w1, w2, bias):
        """Fast path for fn(a, c) = a @ w1 + c @ w2 + bias, fused in one kernel
        (no HBM round-trip of the normalized activations)."""
        D = x.shape[-1]
        assert D == self.dim and x2.shape[-1] == self.dim
        out2d = prenorm2_linear_fused(
            x.reshape(-1, D), x2.reshape(-1, D),
            self.gamma1, self.beta1, self.gamma2, self.beta2,
            w1, w2, bias, eps=self.eps)
        return out2d.reshape(x.shape[:-1] + (w1.shape[1],))


if __name__ == "__main__":
    # D is a multiple of 128 so every vreg / store is lane-dense.
    B, N, D = 2, 8, 128
    key = jax.random.PRNGKey(0)
    kx, ky, kw1, kw2, kb = jax.random.split(key, 5)

    x = jax.random.normal(kx, (B, N, D), dtype=jnp.float32)
    x2 = jax.random.normal(ky, (B, N, D), dtype=jnp.float32)

    # Deterministic params for the wrapped demo fn: fn(a, c) = a@W1 + c@W2 + b.
    w1 = jax.random.normal(kw1, (D, D), dtype=jnp.float32) * 0.05
    w2 = jax.random.normal(kw2, (D, D), dtype=jnp.float32) * 0.05
    bias = jax.random.normal(kb, (D,), dtype=jnp.float32) * 0.05

    def fn(a, c):
        return (jnp.einsum("bnd,de->bne", a, w1)
                + jnp.einsum("bnd,de->bne", c, w2) + bias)

    prenorm2 = PreNorm2Pallas(D, fn)

    # Generic path (single dual-LayerNorm Pallas call + arbitrary fn) and
    # fused fast path (LN + matmul combiner in one kernel).
    out_generic = jax.block_until_ready(prenorm2(x, x2))
    out_fused = jax.block_until_ready(prenorm2.fused_linear(x, x2, w1, w2, bias))

    # Pure-JAX reference of the same semantics (gamma=1, beta=0).
    def ln_ref(v, eps=1e-5):
        mean = jnp.mean(v, axis=-1, keepdims=True)
        var = jnp.mean((v - mean) ** 2, axis=-1, keepdims=True)
        return (v - mean) / jnp.sqrt(var + eps)

    ref = (jnp.einsum("bnd,de->bne", ln_ref(x), w1)
           + jnp.einsum("bnd,de->bne", ln_ref(x2), w2) + bias)

    assert out_fused.shape == (B, N, D)
    assert out_generic.shape == (B, N, D)
    assert jnp.allclose(out_fused, ref, atol=1e-3, rtol=1e-3)
    assert jnp.allclose(out_generic, ref, atol=1e-3, rtol=1e-3)

    print("KERNEL_OK")
</pallas_src>

<mosaic_0001>
module attributes {stable_mosaic.version = 11 : i64} {
  func.func @_dual_layernorm_kernel(%arg0: i32, %arg1: memref<16x128xf32, #tpu.memory_space<vmem>>, %arg2: memref<16x128xf32, #tpu.memory_space<vmem>>, %arg3: memref<1x128xf32, #tpu.memory_space<vmem>>, %arg4: memref<1x128xf32, #tpu.memory_space<vmem>>, %arg5: memref<1x128xf32, #tpu.memory_space<vmem>>, %arg6: memref<1x128xf32, #tpu.memory_space<vmem>>, %arg7: memref<16x128xf32, #tpu.memory_space<vmem>>, %arg8: memref<16x128xf32, #tpu.memory_space<vmem>>) attributes {dimension_semantics = [#tpu.dimension_semantics<parallel>], iteration_bounds = array<i64: 1>, scalar_prefetch = 0 : i64, scratch_operands = 0 : i64, tpu.core_type = #tpu.core_type<tc>, window_params = [{transform_indices = @transform_0, window_bounds = array<i64: 16, 128>}, {transform_indices = @transform_1, window_bounds = array<i64: 16, 128>}, {pipeline_mode = #tpu.pipeline_mode<synchronous>, transform_indices = @transform_2, window_bounds = array<i64: 1, 128>}, {pipeline_mode = #tpu.pipeline_mode<synchronous>, transform_indices = @transform_3, window_bounds = array<i64: 1, 128>}, {pipeline_mode = #tpu.pipeline_mode<synchronous>, transform_indices = @transform_4, window_bounds = array<i64: 1, 128>}, {pipeline_mode = #tpu.pipeline_mode<synchronous>, transform_indices = @transform_5, window_bounds = array<i64: 1, 128>}, {transform_indices = @transform_6, window_bounds = array<i64: 16, 128>}, {transform_indices = @transform_7, window_bounds = array<i64: 16, 128>}]} {
    %c0 = arith.constant 0 : index
    %c0_0 = arith.constant 0 : index
    %0 = vector.load %arg1[%c0, %c0_0] : memref<16x128xf32, #tpu.memory_space<vmem>>, vector<16x128xf32>
    %c0_1 = arith.constant 0 : index
    %c0_2 = arith.constant 0 : index
    %1 = vector.load %arg3[%c0_1, %c0_2] : memref<1x128xf32, #tpu.memory_space<vmem>>, vector<1x128xf32>
    %c0_3 = arith.constant 0 : index
    %c0_4 = arith.constant 0 : index
    %2 = vector.load %arg4[%c0_3, %c0_4] : memref<1x128xf32, #tpu.memory_space<vmem>>, vector<1x128xf32>
    %cst = arith.constant dense<0.000000e+00> : vector<16xf32>
    %3 = vector.multi_reduction <add>, %0, %cst [1] : vector<16x128xf32> to vector<16xf32>
    %4 = vector.shape_cast %3 : vector<16xf32> to vector<16x1xf32>
    %cst_5 = arith.constant 1.280000e+02 : f32
    %5 = vector.broadcast %cst_5 : f32 to vector<16x1xf32>
    %6 = arith.divf %4, %5 : vector<16x1xf32>
    %7 = arith.mulf %0, %0 : vector<16x128xf32>
    %cst_6 = arith.constant dense<0.000000e+00> : vector<16xf32>
    %8 = vector.multi_reduction <add>, %7, %cst_6 [1] : vector<16x128xf32> to vector<16xf32>
    %9 = vector.shape_cast %8 : vector<16xf32> to vector<16x1xf32>
    %cst_7 = arith.constant 1.280000e+02 : f32
    %10 = vector.broadcast %cst_7 : f32 to vector<16x1xf32>
    %11 = arith.divf %9, %10 : vector<16x1xf32>
    %12 = arith.mulf %6, %6 : vector<16x1xf32>
    %13 = arith.subf %11, %12 : vector<16x1xf32>
    %cst_8 = arith.constant 9.99999974E-6 : f32
    %14 = vector.broadcast %cst_8 : f32 to vector<16x1xf32>
    %15 = arith.addf %13, %14 : vector<16x1xf32>
    %16 = math.rsqrt %15 : vector<16x1xf32>
    %17 = vector.broadcast %16 : vector<16x1xf32> to vector<16x128xf32>
    %18 = vector.broadcast %1 : vector<1x128xf32> to vector<16x128xf32>
    %19 = arith.mulf %17, %18 : vector<16x128xf32>
    %20 = vector.broadcast %6 : vector<16x1xf32> to vector<16x128xf32>
    %21 = arith.subf %0, %20 : vector<16x128xf32>
    %22 = arith.mulf %21, %19 : vector<16x128xf32>
    %23 = vector.broadcast %2 : vector<1x128xf32> to vector<16x128xf32>
    %24 = arith.addf %22, %23 : vector<16x128xf32>
    %c0_9 = arith.constant 0 : index
    %c0_10 = arith.constant 0 : index
    %25 = vector.load %arg7[%c0_9, %c0_10] : memref<16x128xf32, #tpu.memory_space<vmem>>, vector<16x128xf32>
    tpu.vector_store %arg7[%c0_9, %c0_10], %24 {strides = array<i32>} : memref<16x128xf32, #tpu.memory_space<vmem>>, vector<16x128xf32>,
    %c0_11 = arith.constant 0 : index
    %c0_12 = arith.constant 0 : index
    %26 = vector.load %arg2[%c0_11, %c0_12] : memref<16x128xf32, #tpu.memory_space<vmem>>, vector<16x128xf32>
    %c0_13 = arith.constant 0 : index
    %c0_14 = arith.constant 0 : index
    %27 = vector.load %arg5[%c0_13, %c0_14] : memref<1x128xf32, #tpu.memory_space<vmem>>, vector<1x128xf32>
    %c0_15 = arith.constant 0 : index
    %c0_16 = arith.constant 0 : index
    %28 = vector.load %arg6[%c0_15, %c0_16] : memref<1x128xf32, #tpu.memory_space<vmem>>, vector<1x128xf32>
    %cst_17 = arith.constant dense<0.000000e+00> : vector<16xf32>
    %29 = vector.multi_reduction <add>, %26, %cst_17 [1] : vector<16x128xf32> to vector<16xf32>
    %30 = vector.shape_cast %29 : vector<16xf32> to vector<16x1xf32>
    %cst_18 = arith.constant 1.280000e+02 : f32
    %31 = vector.broadcast %cst_18 : f32 to vector<16x1xf32>
    %32 = arith.divf %30, %31 : vector<16x1xf32>
    %33 = arith.mulf %26, %26 : vector<16x128xf32>
    %cst_19 = arith.constant dense<0.000000e+00> : vector<16xf32>
    %34 = vector.multi_reduction <add>, %33, %cst_19 [1] : vector<16x128xf32> to vector<16xf32>
    %35 = vector.shape_cast %34 : vector<16xf32> to vector<16x1xf32>
    %cst_20 = arith.constant 1.280000e+02 : f32
    %36 = vector.broadcast %cst_20 : f32 to vector<16x1xf32>
    %37 = arith.divf %35, %36 : vector<16x1xf32>
    %38 = arith.mulf %32, %32 : vector<16x1xf32>
    %39 = arith.subf %37, %38 : vector<16x1xf32>
    %cst_21 = arith.constant 9.99999974E-6 : f32
    %40 = vector.broadcast %cst_21 : f32 to vector<16x1xf32>
    %41 = arith.addf %39, %40 : vector<16x1xf32>
    %42 = math.rsqrt %41 : vector<16x1xf32>
    %43 = vector.broadcast %42 : vector<16x1xf32> to vector<16x128xf32>
    %44 = vector.broadcast %27 : vector<1x128xf32> to vector<16x128xf32>
    %45 = arith.mulf %43, %44 : vector<16x128xf32>
    %46 = vector.broadcast %32 : vector<16x1xf32> to vector<16x128xf32>
    %47 = arith.subf %26, %46 : vector<16x128xf32>
    %48 = arith.mulf %47, %45 : vector<16x128xf32>
    %49 = vector.broadcast %28 : vector<1x128xf32> to vector<16x128xf32>
    %50 = arith.addf %48, %49 : vector<16x128xf32>
    %c0_22 = arith.constant 0 : index
    %c0_23 = arith.constant 0 : index
    %51 = vector.load %arg8[%c0_22, %c0_23] : memref<16x128xf32, #tpu.memory_space<vmem>>, vector<16x128xf32>
    tpu.vector_store %arg8[%c0_22, %c0_23], %50 {strides = array<i32>} : memref<16x128xf32, #tpu.memory_space<vmem>>, vector<16x128xf32>,
    return
  }
  func.func @transform_0(%arg0: i32) -> (i32, i32) {
    %c0_i32 = arith.constant 0 : i32
    %c0_i32_0 = arith.constant 0 : i32
    return %arg0, %c0_i32 : i32, i32
  }
  func.func @transform_1(%arg0: i32) -> (i32, i32) {
    %c0_i32 = arith.constant 0 : i32
    %c0_i32_0 = arith.constant 0 : i32
    return %arg0, %c0_i32 : i32, i32
  }
  func.func @transform_2(%arg0: i32) -> (i32, i32) {
    %c0_i32 = arith.constant 0 : i32
    %c0_i32_0 = arith.constant 0 : i32
    %c0_i32_1 = arith.constant 0 : i32
    return %c0_i32, %c0_i32_0 : i32, i32
  }
  func.func @transform_3(%arg0: i32) -> (i32, i32) {
    %c0_i32 = arith.constant 0 : i32
    %c0_i32_0 = arith.constant 0 : i32
    %c0_i32_1 = arith.constant 0 : i32
    return %c0_i32, %c0_i32_0 : i32, i32
  }
  func.func @transform_4(%arg0: i32) -> (i32, i32) {
    %c0_i32 = arith.constant 0 : i32
    %c0_i32_0 = arith.constant 0 : i32
    %c0_i32_1 = arith.constant 0 : i32
    return %c0_i32, %c0_i32_0 : i32, i32
  }
  func.func @transform_5(%arg0: i32) -> (i32, i32) {
    %c0_i32 = arith.constant 0 : i32
    %c0_i32_0 = arith.constant 0 : i32
    %c0_i32_1 = arith.constant 0 : i32
    return %c0_i32, %c0_i32_0 : i32, i32
  }
  func.func @transform_6(%arg0: i32) -> (i32, i32) {
    %c0_i32 = arith.constant 0 : i32
    %c0_i32_0 = arith.constant 0 : i32
    return %arg0, %c0_i32 : i32, i32
  }
  func.func @transform_7(%arg0: i32) -> (i32, i32) {
    %c0_i32 = arith.constant 0 : i32
    %c0_i32_0 = arith.constant 0 : i32
    return %arg0, %c0_i32 : i32, i32
  }
}

</mosaic_0001>

<llo_original>
// kernel: tpu_custom_call.1
$region0: #{tpu_custom_call.1}
  #allocation0 [shape = 'u32[]', space=smem, size = 0x4, offset = 0x4, fixed_abs, tag = 'smem constant byte address 0x4 - core index']
  #allocation1 [shape = 'u32[72,128]{1,0:T(1,128)}', space=vmem, size = 0x9000, scoped, tag = 'internal scratch']
  %s0 = inlined_call_operand.hbm [shape: f32[16,128], index: 0, kind: input, shape index: {}]
  %s1 = inlined_call_operand.hbm [shape: f32[16,128], index: 1, kind: input, shape index: {}]
  %s2 = inlined_call_operand.vmem [shape: f32[1,128], index: 2, kind: input, shape index: {}]
  %s3 = inlined_call_operand.vmem [shape: f32[1,128], index: 3, kind: input, shape index: {}]
  %s4 = inlined_call_operand.vmem [shape: f32[1,128], index: 4, kind: input, shape index: {}]
  %s5 = inlined_call_operand.vmem [shape: f32[1,128], index: 5, kind: input, shape index: {}]
  %s6 = inlined_call_operand.hbm [shape: f32[16,128], index: 6, kind: output, shape index: {0}]
  %s7 = inlined_call_operand.hbm [shape: f32[16,128], index: 7, kind: output, shape index: {1}]
  %8 = xla_tuple %s6, %s7
  %s9 = sld [smem:[#allocation0]]
  $region50: #{tpu_custom_call.1} parent=0
    _
  %s11 = ssub.s32 1, %s9
  %s12 = scalar_select 0, %s11, %s9
  $region1: #{tpu_custom_call.1} parent=0
    #allocation2 [shape = 'u8[8192]{0}', space=vmem, size = 0x2000, scoped, tag = 'input window, operand 0, single buffered']
    #allocation3 [shape = 's32[1]{0}', space=sflag, size = 0x4, scoped, tag = 'scoped memory for tpu_custom_call.1']
    #allocation4 [shape = 's32[1]{0}', space=sflag, size = 0x4, scoped, tag = 'scoped memory for tpu_custom_call.1']
    #allocation5 [shape = 'u8[8192]{0}', space=vmem, size = 0x2000, scoped, tag = 'input window, operand 1, single buffered']
    #allocation6 [shape = 's32[1]{0}', space=sflag, size = 0x4, scoped, tag = 'scoped memory for tpu_custom_call.1']
    #allocation7 [shape = 'u8[8192]{0}', space=vmem, size = 0x2000, scoped, tag = 'output window, operand 0, single buffered']
    #allocation8 [shape = 'u8[8192]{0}', space=vmem, size = 0x2000, scoped, tag = 'output window, operand 1, single buffered']
    #allocation9 [shape = 's32[1]{0}', space=sflag, size = 0x4, scoped, tag = 'scoped memory for tpu_custom_call.1']
    %13 = vsyncpa [#allocation3], 0
    %14 = vsyncpa [#allocation6], 0
    %15 = vsyncpa [#allocation4], 0
    %16 = vsyncpa [#allocation9], 0
    // Predicated region
    $region2: #{tpu_custom_call.1} parent=1 // pred_check
      _
    $region3: #{tpu_custom_call.1} parent=1 // pred_check_branch
      %18 = sbr.rel (0) target = $region5
    $region4: #{tpu_custom_call.1} parent=1 // pred_region
      %20 = vsyncadd [#allocation3], 0
      %s21 = sshll.u32 %s0, 4
      %s22 = int_to_ptr.hbm [resolvable:$true] %s21
      %s23 = sshll.u32 [#allocation2], 4
      %s24 = int_to_ptr.vmem [resolvable:$true] %s23
      %29 = dma.hbm_to_vmem [thread:$0]  %s22, 256, %s24, [#allocation3], 128, 128, 8
    $region5: #{tpu_custom_call.1} parent=1 // pred_fallthru
      _
    // Predicated region
    $region6: #{tpu_custom_call.1} parent=1 // pred_check
      _
    $region7: #{tpu_custom_call.1} parent=1 // pred_check_branch
      %31 = sbr.rel (0) target = $region9
    $region8: #{tpu_custom_call.1} parent=1 // pred_region
      %33 = vsyncadd [#allocation6], 0
      %s34 = sshll.u32 %s1, 4
      %s35 = int_to_ptr.hbm [resolvable:$true] %s34
      %s36 = sshll.u32 [#allocation5], 4
      %s37 = int_to_ptr.vmem [resolvable:$true] %s36
      %42 = dma.hbm_to_vmem [thread:$0]  %s35, 256, %s37, [#allocation6], 128, 128, 8
    $region9: #{tpu_custom_call.1} parent=1 // pred_fallthru
      _
    // Predicated region
    $region10: #{tpu_custom_call.1} parent=1 // pred_check
      _
    $region11: #{tpu_custom_call.1} parent=1 // pred_check_branch
      %44 = sbr.rel (0) target = $region13
    $region12: #{tpu_custom_call.1} parent=1 // pred_region
      _
    $region13: #{tpu_custom_call.1} parent=1 // pred_fallthru
      _
    // Predicated region
    $region14: #{tpu_custom_call.1} parent=1 // pred_check
      _
    $region15: #{tpu_custom_call.1} parent=1 // pred_check_branch
      %46 = sbr.rel (0) target = $region17
    $region16: #{tpu_custom_call.1} parent=1 // pred_region
      _
    $region17: #{tpu_custom_call.1} parent=1 // pred_fallthru
      _
    // Predicated region
    $region18: #{tpu_custom_call.1} parent=1 // pred_check
      _
    $region19: #{tpu_custom_call.1} parent=1 // pred_check_branch
      %48 = sbr.rel (0) target = $region21
    $region20: #{tpu_custom_call.1} parent=1 // pred_region
      _
    $region21: #{tpu_custom_call.1} parent=1 // pred_fallthru
      _
    // Predicated region
    $region22: #{tpu_custom_call.1} parent=1 // pred_check
      _
    $region23: #{tpu_custom_call.1} parent=1 // pred_check_branch
      %50 = sbr.rel (0) target = $region25
    $region24: #{tpu_custom_call.1} parent=1 // pred_region
      _
    $region25: #{tpu_custom_call.1} parent=1 // pred_fallthru
      _
    // Predicated region
    $region26: #{tpu_custom_call.1} parent=1 // pred_check
      _
    $region27: #{tpu_custom_call.1} parent=1 // pred_check_branch
      %52 = sbr.rel (0) target = $region29
    $region28: #{tpu_custom_call.1} parent=1 // pred_region
      %54 = dma.done [#allocation3], 256
    $region29: #{tpu_custom_call.1} parent=1 // pred_fallthru
      _
    // Predicated region
    $region30: #{tpu_custom_call.1} parent=1 // pred_check
      _
    $region31: #{tpu_custom_call.1} parent=1 // pred_check_branch
      %56 = sbr.rel (0) target = $region33
    $region32: #{tpu_custom_call.1} parent=1 // pred_region
      %58 = dma.done [#allocation6], 256
    $region33: #{tpu_custom_call.1} parent=1 // pred_fallthru
      _
    %v59 = vld [vmem:[#allocation2] sm:$0xff]
    %v60 = vld [vmem:[#allocation2 + $0x8] sm:$0xff]
    %v61 = vld [vmem:[%s2] sm:$0x1]
    %v62 = vld [vmem:[%s3] sm:$0x1]
    %63 = vadd.xlane.f32.xlu0 %v59
    %v64 = vpop.xlane.xlu0 %63
    %65 = vadd.xlane.f32.xlu0 %v60
    %v66 = vpop.xlane.xlu0 %65
    %v67 = vrcp.pop 128.0
    %v68 = vmul.f32 128.0, %v67
    %v69 = vsub.f32 1.0, %v68
    %v70 = vmul.f32 %v67, %v69
    %v71 = vadd.f32 %v67, %v70
    %vm72 = vweird.f32 %v67
    %v73 = vsel %vm72, %v67, %v71
    %v74 = vmul.f32 %v64, %v73
    %v75 = vmul.f32 %v66, %v73
    %v76 = vmul.f32 %v59, %v59
    %v77 = vmul.f32 %v60, %v60
    %78 = vadd.xlane.f32.xlu0 %v76
    %v79 = vpop.xlane.xlu0 %78
    %80 = vadd.xlane.f32.xlu0 %v77
    %v81 = vpop.xlane.xlu0 %80
    %v82 = vmul.f32 %v79, %v73
    %v83 = vmul.f32 %v81, %v73
    %v84 = vmul.f32 %v74, %v74
    %v85 = vmul.f32 %v75, %v75
    %v86 = vsub.f32 %v82, %v84
    %v87 = vsub.f32 %v83, %v85
    %v88 = vadd.f32 %v86, 1e-05
    %v89 = vadd.f32 %v87, 1e-05
    %v90 = vrsqrt.pop %v88
    %v91 = vmul.f32 %v90, %v88
    %v92 = vmul.f32 %v91, %v90
    %v93 = vmul.f32 0.5, %v92
    %v94 = vsub.f32 1.5, %v93
    %v95 = vmul.f32 %v90, %v94
    %vm96 = vweird.f32 %v88
    %vm97 = vweird.f32 %v90
    %vm98 = vmor %vm96, %vm97
    %v99 = vsel %vm98, %v90, %v95
    %v100 = vrsqrt.pop %v89
    %v101 = vmul.f32 %v100, %v89
    %v102 = vmul.f32 %v101, %v100
    %v103 = vmul.f32 0.5, %v102
    %v104 = vsub.f32 1.5, %v103
    %v105 = vmul.f32 %v100, %v104
    %vm106 = vweird.f32 %v89
    %vm107 = vweird.f32 %v100
    %vm108 = vmor %vm106, %vm107
    %v109 = vsel %vm108, %v100, %v105
    %v111 = vperm.slane %v61, 0
    %v113 = vmul.f32 %v99, %v111
    %v114 = vmul.f32 %v109, %v111
    %v115 = vsub.f32 %v59, %v74
    %v116 = vsub.f32 %v60, %v75
    %v117 = vmul.f32 %v115, %v113
    %v118 = vmul.f32 %v116, %v114
    %v120 = vperm.slane %v62, 0
    %v122 = vadd.f32 %v117, %v120
    %v123 = vadd.f32 %v118, %v120
    %124 = vst [vmem:[#allocation7] sm:$0xff] %v122
    %125 = vst [vmem:[#allocation7 + $0x8] sm:$0xff] %v123
    %v126 = vld [vmem:[#allocation5] sm:$0xff]
    %v127 = vld [vmem:[#allocation5 + $0x8] sm:$0xff]
    %v128 = vld [vmem:[%s4] sm:$0x1]
    %v129 = vld [vmem:[%s5] sm:$0x1]
    %130 = vadd.xlane.f32.xlu0 %v126
    %v131 = vpop.xlane.xlu0 %130
    %132 = vadd.xlane.f32.xlu0 %v127
    %v133 = vpop.xlane.xlu0 %132
    %v134 = vmul.f32 %v131, %v73
    %v135 = vmul.f32 %v133, %v73
    %v136 = vmul.f32 %v126, %v126
    %v137 = vmul.f32 %v127, %v127
    %138 = vadd.xlane.f32.xlu0 %v136
    %v139 = vpop.xlane.xlu0 %138
    %140 = vadd.xlane.f32.xlu0 %v137
    %v141 = vpop.xlane.xlu0 %140
    %v142 = vmul.f32 %v139, %v73
    %v143 = vmul.f32 %v141, %v73
    %v144 = vmul.f32 %v134, %v134
    %v145 = vmul.f32 %v135, %v135
    %v146 = vsub.f32 %v142, %v144
    %v147 = vsub.f32 %v143, %v145
    %v148 = vadd.f32 %v146, 1e-05
    %v149 = vadd.f32 %v147, 1e-05
    %v150 = vrsqrt.pop %v148
    %v151 = vmul.f32 %v150, %v148
    %v152 = vmul.f32 %v151, %v150
    %v153 = vmul.f32 0.5, %v152
    %v154 = vsub.f32 1.5, %v153
    %v155 = vmul.f32 %v150, %v154
    %vm156 = vweird.f32 %v148
    %vm157 = vweird.f32 %v150
    %vm158 = vmor %vm156, %vm157
    %v159 = vsel %vm158, %v150, %v155
    %v160 = vrsqrt.pop %v149
    %v161 = vmul.f32 %v160, %v149
    %v162 = vmul.f32 %v161, %v160
    %v163 = vmul.f32 0.5, %v162
    %v164 = vsub.f32 1.5, %v163
    %v165 = vmul.f32 %v160, %v164
    %vm166 = vweird.f32 %v149
    %vm167 = vweird.f32 %v160
    %vm168 = vmor %vm166, %vm167
    %v169 = vsel %vm168, %v160, %v165
    %v171 = vperm.slane %v128, 0
    %v173 = vmul.f32 %v159, %v171
    %v174 = vmul.f32 %v169, %v171
    %v175 = vsub.f32 %v126, %v134
    %v176 = vsub.f32 %v127, %v135
    %v177 = vmul.f32 %v175, %v173
    %v178 = vmul.f32 %v176, %v174
    %v180 = vperm.slane %v129, 0
    %v182 = vadd.f32 %v177, %v180
    %v183 = vadd.f32 %v178, %v180
    %184 = vst [vmem:[#allocation8] sm:$0xff] %v182
    %185 = vst [vmem:[#allocation8 + $0x8] sm:$0xff] %v183
    // Predicated region
    $region34: #{tpu_custom_call.1} parent=1 // pred_check
      _
    $region35: #{tpu_custom_call.1} parent=1 // pred_check_branch
      %187 = sbr.rel (0) target = $region37
    $region36: #{tpu_custom_call.1} parent=1 // pred_region
      %189 = vsyncadd [#allocation4], 0
      %s190 = sshll.u32 [#allocation7], 4
      %s191 = int_to_ptr.vmem [resolvable:$true] %s190
      %s192 = sshll.u32 %s6, 4
      %s193 = int_to_ptr.hbm [resolvable:$true] %s192
      %198 = dma.vmem_to_hbm [thread:$0]  %s191, 256, %s193, [#allocation4], 128, 128, 8
    $region37: #{tpu_custom_call.1} parent=1 // pred_fallthru
      _
    // Predicated region
    $region38: #{tpu_custom_call.1} parent=1 // pred_check
      _
    $region39: #{tpu_custom_call.1} parent=1 // pred_check_branch
      %200 = sbr.rel (0) target = $region41
    $region40: #{tpu_custom_call.1} parent=1 // pred_region
      %202 = vsyncadd [#allocation9], 0
      %s203 = sshll.u32 [#allocation8], 4
      %s204 = int_to_ptr.vmem [resolvable:$true] %s203
      %s205 = sshll.u32 %s7, 4
      %s206 = int_to_ptr.hbm [resolvable:$true] %s205
      %211 = dma.vmem_to_hbm [thread:$0]  %s204, 256, %s206, [#allocation9], 128, 128, 8
    $region41: #{tpu_custom_call.1} parent=1 // pred_fallthru
      _
    // Predicated region
    $region42: #{tpu_custom_call.1} parent=1 // pred_check
      _
    $region43: #{tpu_custom_call.1} parent=1 // pred_check_branch
      %213 = sbr.rel (0) target = $region45
    $region44: #{tpu_custom_call.1} parent=1 // pred_region
      %215 = dma.done [#allocation4], 256
    $region45: #{tpu_custom_call.1} parent=1 // pred_fallthru
      _
    // Predicated region
    $region46: #{tpu_custom_call.1} parent=1 // pred_check
      _
    $region47: #{tpu_custom_call.1} parent=1 // pred_check_branch
      %217 = sbr.rel (0) target = $region49
    $region48: #{tpu_custom_call.1} parent=1 // pred_region
      %219 = dma.done [#allocation9], 256
    $region49: #{tpu_custom_call.1} parent=1 // pred_fallthru
      _
    %220 = vsyncpa [#allocation3], 1
    %221 = vsyncpa [#allocation6], 1
    %222 = vsyncpa [#allocation4], 1
    %223 = vsyncpa [#allocation9], 1

</llo_original>
